<compile_context>
chip_gen: v7x
topology: tpu7x:2x2x1
jax: 0.10.0
libtpu: 0.0.40
codegen_flags: <defaults>
</compile_context>

<pallas_src>
import numpy as np
import jax
import jax.numpy as jnp
from jax.experimental import pallas as pl
from jax.experimental.pallas import tpu as pltpu


# ------------------------------------------------------------------
# Host-side folding of the module parameters into temporal operators.
# Module hyper-parameters (kernel_size=[13,21,31], dilation=[3,5,7]):
#   branch 0: conv01 k=5  pad=2,  conv_spatial01 k=3 dil=3 pad=3
#   branch 1: conv02 k=9  pad=4,  conv_spatial02 k=3 dil=5 pad=5
#   branch 2: conv03 k=13 pad=6,  conv_spatial03 k=3 dil=7 pad=7
# ------------------------------------------------------------------
_BRANCHES = [("01", 5, 3), ("02", 9, 5), ("03", 13, 7)]  # (name, K1, dilation)


def _band_matrix(taps, dilation, t):
    """(t,t) operator of a 'same'-padded 1-D cross-correlation along T."""
    taps = np.asarray(taps, np.float64)
    k = taps.shape[0]
    pad = dilation * (k - 1) // 2
    m = np.zeros((t, t), np.float64)
    for kk in range(k):
        off = kk * dilation - pad
        for i in range(t):
            j = i + off
            if 0 <= j < t:
                m[i, j] = taps[kk]
    return m


def build_temporal_operator(weights, t):
    """Fold all three branches into M_avg, M_mx (T,T) and bias (T,1)."""
    m_avg = np.zeros((t, t), np.float64)
    m_mx = np.zeros((t, t), np.float64)
    bias = np.zeros((t,), np.float64)
    for name, k1, dil in _BRANCHES:
        w1, b1 = weights["conv" + name]            # w1: (2, K1), b1: (1,)
        w2, b2 = weights["conv_spatial" + name]    # w2: (1, 3),  b2: (1,)
        w1 = np.asarray(w1, np.float64)
        w2 = np.asarray(w2, np.float64)
        b1 = float(np.asarray(b1)[0])
        b2 = float(np.asarray(b2)[0])
        a1_avg = _band_matrix(w1[0], 1, t)
        a1_mx = _band_matrix(w1[1], 1, t)
        a2 = _band_matrix(w2[0], dil, t)
        m_avg += a2 @ a1_avg
        m_mx += a2 @ a1_mx
        bias += b1 * a2.sum(axis=1) + b2
    return (jnp.asarray(m_avg, jnp.float32),
            jnp.asarray(m_mx, jnp.float32),
            jnp.asarray(bias, jnp.float32).reshape(t, 1))


# ------------------------------------------------------------------
# Pallas kernel
# ------------------------------------------------------------------
def _pta_gl_kernel(m_avg_ref, m_mx_ref, bias_ref, x_ref, o_ref):
    """m_avg/m_mx: VMEM (T,T) f32; bias: VMEM (T,1) f32;
    x_ref/o_ref: VMEM blocks (1, C, T, TILE_HW) in the I/O dtype."""
    x = x_ref[0]                                   # (C, T, TILE_HW)
    xf = x.astype(jnp.float32)

    # Channel statistics (per spatial element / per time step).
    # NOTE: for very large C this could be chunked with a fori_loop to bound
    # live ranges; at the chosen tile sizes a single pass is fine.
    avg = jnp.mean(xf, axis=0)                     # (T, TILE_HW)
    mx = jnp.max(xf, axis=0)                       # (T, TILE_HW)

    # Temporal attention map: two small MXU matmuls + bias (no padded
    # concatenates, no non-aligned sublane slices).
    attn = (jnp.dot(m_avg_ref[...], avg, preferred_element_type=jnp.float32)
            + jnp.dot(m_mx_ref[...], mx, preferred_element_type=jnp.float32)
            + bias_ref[...])                       # (T,1) broadcasts over lanes

    sig = jax.nn.sigmoid(attn)                     # (T, TILE_HW)
    y = xf * sig[None, :, :]                       # gate, broadcast over C

    # lcl_TA + gl_TA == leaky_relu(y, 0.01) + y == y * (2 if y>0 else 1.01)
    scale = jnp.where(y > 0.0, jnp.float32(2.0), jnp.float32(1.01))
    o_ref[0] = (y * scale).astype(o_ref.dtype)


def _choose_tile_hw(hw, c, t, itemsize, *, max_tile_hw=512,
                    block_budget_bytes=20 * 1024 * 1024):
    """Largest lane-dense tile (multiple of 128 dividing HW) under budget."""
    if hw % 128 != 0:
        return hw  # full-extent last dim: still correct (lane-masked stores)
    # input block + output block, double-buffered
    bytes_per_lane = 4 * c * t * itemsize
    cap = max(128, min(max_tile_hw,
                       (block_budget_bytes // max(bytes_per_lane, 1))
                       // 128 * 128))
    best = 128
    cand = 256
    while cand <= min(hw, cap):
        if hw % cand == 0:
            best = cand
        cand += 128
    return best


def pta_gl_pallas(x, m_avg, m_mx, bias, *, max_tile_hw=512,
                  vmem_limit_bytes=32 * 1024 * 1024):
    """x: (B, C, T, H, W); m_avg/m_mx: (T,T) f32; bias: (T,1) f32.
    Returns (B, C, T, H, W) in x.dtype."""
    b, c, t, h, w = x.shape
    hw = h * w
    xr = x.reshape(b, c, t, hw)                    # keep I/O dtype (bf16 ok)
    tile = _choose_tile_hw(hw, c, t, xr.dtype.itemsize,
                           max_tile_hw=max_tile_hw)
    n_hw = hw // tile

    out = pl.pallas_call(
        _pta_gl_kernel,
        out_shape=jax.ShapeDtypeStruct((b, c, t, hw), x.dtype),
        grid=(b, n_hw),
        in_specs=[
            pl.BlockSpec((t, t), lambda i, j: (0, 0)),           # M_avg
            pl.BlockSpec((t, t), lambda i, j: (0, 0)),           # M_mx
            pl.BlockSpec((t, 1), lambda i, j: (0, 0)),           # bias
            pl.BlockSpec((1, c, t, tile), lambda i, j: (i, 0, 0, j)),  # x
        ],
        out_specs=pl.BlockSpec((1, c, t, tile), lambda i, j: (i, 0, 0, j)),
        compiler_params=pltpu.CompilerParams(
            dimension_semantics=("parallel", "parallel"),
            vmem_limit_bytes=vmem_limit_bytes),
    )(m_avg, m_mx, bias, xr)
    return out.reshape(b, c, t, h, w)


# ------------------------------------------------------------------
# Deterministic parameter init (PyTorch Conv3d-style uniform bounds).
# ------------------------------------------------------------------
def init_params(key):
    def init_conv(k, cin, kk):
        bound = 1.0 / np.sqrt(cin * kk)
        k1, k2 = jax.random.split(k)
        wgt = jax.random.uniform(k1, (cin, kk), jnp.float32, -bound, bound)
        bias = jax.random.uniform(k2, (1,), jnp.float32, -bound, bound)
        return wgt, bias

    keys = jax.random.split(key, 6)
    return {
        "conv01": init_conv(keys[0], 2, 5),
        "conv_spatial01": init_conv(keys[1], 1, 3),
        "conv02": init_conv(keys[2], 2, 9),
        "conv_spatial02": init_conv(keys[3], 1, 3),
        "conv03": init_conv(keys[4], 2, 13),
        "conv_spatial03": init_conv(keys[5], 1, 3),
    }


# ------------------------------------------------------------------
# Pure-JAX reference mirroring the PyTorch forward literally (including the
# height split / concat path) — used only to validate the kernel.
# ------------------------------------------------------------------
def _pta_ref(x, weights):
    b, c, t, h, w = x.shape
    avg = jnp.mean(x, axis=1, keepdims=True)
    mx = jnp.max(x, axis=1, keepdims=True)
    x1 = jnp.concatenate([avg, mx], axis=1).reshape(b, 2, t, h * w)

    def conv1d_t(inp, wgt, bias, pad, dil):
        out = jax.lax.conv_general_dilated(
            inp, wgt[None, :, :, None],
            window_strides=(1, 1),
            padding=[(pad, pad), (0, 0)],
            rhs_dilation=(dil, 1),
            dimension_numbers=("NCHW", "OIHW", "NCHW"))
        return out + bias.reshape(1, 1, 1, 1)

    total = 0.0
    for name, k1, dil in _BRANCHES:
        w1, b1 = weights["conv" + name]
        w2, b2 = weights["conv_spatial" + name]
        a = conv1d_t(x1, w1, b1, (k1 - 1) // 2, 1)
        a = conv1d_t(a, w2, b2, dil, dil)
        total = total + a
    sig = jax.nn.sigmoid(total).reshape(b, 1, t, h, w)
    return x * sig


def forward_ref(x, weights):
    b, c, t, h, w = x.shape
    split = h // 4
    parts = [x[:, :, :, s:s + split, :] for s in range(0, h, split)]
    lcl = jax.nn.leaky_relu(
        jnp.concatenate([_pta_ref(p, weights) for p in parts], axis=3), 0.01)
    gl = _pta_ref(x, weights)
    return lcl + gl


if __name__ == "__main__":
    key = jax.random.PRNGKey(0)
    kp, kx = jax.random.split(key)
    weights = init_params(kp)

    # Small shapes consistent with the module: (b, c, t, h, w); h divisible
    # by 4 for the height split, h*w a multiple of 128 so the HW-tiled grid
    # (B, HW//TILE) is exercised (here: tile=512 -> grid (2, 2)).
    b, c, t, h, w = 2, 4, 8, 16, 64
    x = jax.random.normal(kx, (b, c, t, h, w), dtype=jnp.float32)

    m_avg, m_mx, bias = build_temporal_operator(weights, t)
    out = jax.block_until_ready(pta_gl_pallas(x, m_avg, m_mx, bias))

    ref = jax.block_until_ready(forward_ref(x, weights))
    np.testing.assert_allclose(np.asarray(out), np.asarray(ref),
                               rtol=1e-4, atol=1e-5)
    print("KERNEL_OK")
</pallas_src>

<mosaic_0001>
module attributes {stable_mosaic.version = 11 : i64} {
  func.func @_pta_gl_kernel(%arg0: i32, %arg1: i32, %arg2: memref<8x8xf32, #tpu.memory_space<vmem>>, %arg3: memref<8x8xf32, #tpu.memory_space<vmem>>, %arg4: memref<8x1xf32, #tpu.memory_space<vmem>>, %arg5: memref<1x4x8x512xf32, #tpu.memory_space<vmem>>, %arg6: memref<1x4x8x512xf32, #tpu.memory_space<vmem>>) attributes {dimension_semantics = [#tpu.dimension_semantics<parallel>, #tpu.dimension_semantics<parallel>], iteration_bounds = array<i64: 2, 2>, scalar_prefetch = 0 : i64, scratch_operands = 0 : i64, tpu.core_type = #tpu.core_type<tc>, window_params = [{pipeline_mode = #tpu.pipeline_mode<synchronous>, transform_indices = @transform_0, window_bounds = array<i64: 8, 8>}, {pipeline_mode = #tpu.pipeline_mode<synchronous>, transform_indices = @transform_1, window_bounds = array<i64: 8, 8>}, {pipeline_mode = #tpu.pipeline_mode<synchronous>, transform_indices = @transform_2, window_bounds = array<i64: 8, 1>}, {transform_indices = @transform_3, window_bounds = array<i64: 1, 4, 8, 512>}, {transform_indices = @transform_4, window_bounds = array<i64: 1, 4, 8, 512>}]} {
    %c0 = arith.constant 0 : index
    %c0_0 = arith.constant 0 : index
    %c0_1 = arith.constant 0 : index
    %c0_2 = arith.constant 0 : index
    %0 = vector.load %arg5[%c0, %c0_0, %c0_1, %c0_2] : memref<1x4x8x512xf32, #tpu.memory_space<vmem>>, vector<1x4x8x512xf32>
    %1 = vector.shape_cast %0 : vector<1x4x8x512xf32> to vector<4x8x512xf32>
    %cst = arith.constant dense<0.000000e+00> : vector<8x512xf32>
    %2 = vector.multi_reduction <add>, %1, %cst [0] : vector<4x8x512xf32> to vector<8x512xf32>
    %cst_3 = arith.constant 4.000000e+00 : f32
    %3 = vector.broadcast %cst_3 : f32 to vector<8x512xf32>
    %4 = arith.divf %2, %3 : vector<8x512xf32>
    %cst_4 = arith.constant dense<0xFF800000> : vector<8x512xf32>
    %5 = vector.multi_reduction <maximumf>, %1, %cst_4 [0] : vector<4x8x512xf32> to vector<8x512xf32>
    %c0_5 = arith.constant 0 : index
    %c0_6 = arith.constant 0 : index
    %6 = vector.load %arg2[%c0_5, %c0_6] : memref<8x8xf32, #tpu.memory_space<vmem>>, vector<8x8xf32>
    %cst_7 = arith.constant dense<0.000000e+00> : vector<8x512xf32>
    %7 = tpu.matmul %6, %4, %cst_7 {dimension_numbers = #tpu.dot_dimension_numbers<[1], [0], [0], [1], [0, 0, 1, 1], [], []>} : vector<8x8xf32>, vector<8x512xf32>, vector<8x512xf32> -> vector<8x512xf32>
    %c0_8 = arith.constant 0 : index
    %c0_9 = arith.constant 0 : index
    %8 = vector.load %arg3[%c0_8, %c0_9] : memref<8x8xf32, #tpu.memory_space<vmem>>, vector<8x8xf32>
    %cst_10 = arith.constant dense<0.000000e+00> : vector<8x512xf32>
    %9 = tpu.matmul %8, %5, %cst_10 {dimension_numbers = #tpu.dot_dimension_numbers<[1], [0], [0], [1], [0, 0, 1, 1], [], []>} : vector<8x8xf32>, vector<8x512xf32>, vector<8x512xf32> -> vector<8x512xf32>
    %10 = arith.addf %7, %9 : vector<8x512xf32>
    %c0_11 = arith.constant 0 : index
    %c0_12 = arith.constant 0 : index
    %11 = vector.load %arg4[%c0_11, %c0_12] : memref<8x1xf32, #tpu.memory_space<vmem>>, vector<8x1xf32>
    %12 = vector.broadcast %11 : vector<8x1xf32> to vector<8x512xf32>
    %13 = arith.addf %10, %12 : vector<8x512xf32>
    %14 = arith.negf %13 : vector<8x512xf32>
    %15 = math.exp %14 : vector<8x512xf32>
    %cst_13 = arith.constant 1.000000e+00 : f32
    %16 = vector.broadcast %cst_13 : f32 to vector<8x512xf32>
    %17 = arith.addf %16, %15 : vector<8x512xf32>
    %18 = arith.divf %16, %17 : vector<8x512xf32>
    %19 = vector.shape_cast %18 : vector<8x512xf32> to vector<1x8x512xf32>
    %20 = vector.broadcast %19 : vector<1x8x512xf32> to vector<4x8x512xf32>
    %21 = arith.mulf %1, %20 : vector<4x8x512xf32>
    %cst_14 = arith.constant 0.000000e+00 : f32
    %22 = vector.broadcast %cst_14 : f32 to vector<4x8x512xf32>
    %23 = arith.cmpf ogt, %21, %22 : vector<4x8x512xf32>
    %cst_15 = arith.constant 2.000000e+00 : f32
    %cst_16 = arith.constant 1.010000e+00 : f32
    %24 = vector.broadcast %cst_15 : f32 to vector<4x8x512xf32>
    %25 = vector.broadcast %cst_16 : f32 to vector<4x8x512xf32>
    %26 = arith.select %23, %24, %25 : vector<4x8x512xi1>, vector<4x8x512xf32>
    %27 = arith.mulf %21, %26 : vector<4x8x512xf32>
    %c0_17 = arith.constant 0 : index
    %c0_18 = arith.constant 0 : index
    %c0_19 = arith.constant 0 : index
    %c0_20 = arith.constant 0 : index
    %28 = vector.load %arg6[%c0_17, %c0_18, %c0_19, %c0_20] : memref<1x4x8x512xf32, #tpu.memory_space<vmem>>, vector<1x4x8x512xf32>
    %29 = vector.shape_cast %28 : vector<1x4x8x512xf32> to vector<4x8x512xf32>
    %30 = vector.shape_cast %27 : vector<4x8x512xf32> to vector<1x4x8x512xf32>
    tpu.vector_store %arg6[%c0_17, %c0_18, %c0_19, %c0_20], %30 {strides = array<i32>} : memref<1x4x8x512xf32, #tpu.memory_space<vmem>>, vector<1x4x8x512xf32>,
    return
  }
  func.func @transform_0(%arg0: i32, %arg1: i32) -> (i32, i32) {
    %c0_i32 = arith.constant 0 : i32
    %c0_i32_0 = arith.constant 0 : i32
    %c0_i32_1 = arith.constant 0 : i32
    return %c0_i32, %c0_i32_0 : i32, i32
  }
  func.func @transform_1(%arg0: i32, %arg1: i32) -> (i32, i32) {
    %c0_i32 = arith.constant 0 : i32
    %c0_i32_0 = arith.constant 0 : i32
    %c0_i32_1 = arith.constant 0 : i32
    return %c0_i32, %c0_i32_0 : i32, i32
  }
  func.func @transform_2(%arg0: i32, %arg1: i32) -> (i32, i32) {
    %c0_i32 = arith.constant 0 : i32
    %c0_i32_0 = arith.constant 0 : i32
    %c0_i32_1 = arith.constant 0 : i32
    return %c0_i32, %c0_i32_0 : i32, i32
  }
  func.func @transform_3(%arg0: i32, %arg1: i32) -> (i32, i32, i32, i32) {
    %c0_i32 = arith.constant 0 : i32
    %c0_i32_0 = arith.constant 0 : i32
    %c0_i32_1 = arith.constant 0 : i32
    return %arg0, %c0_i32, %c0_i32_0, %arg1 : i32, i32, i32, i32
  }
  func.func @transform_4(%arg0: i32, %arg1: i32) -> (i32, i32, i32, i32) {
    %c0_i32 = arith.constant 0 : i32
    %c0_i32_0 = arith.constant 0 : i32
    %c0_i32_1 = arith.constant 0 : i32
    return %arg0, %c0_i32, %c0_i32_0, %arg1 : i32, i32, i32, i32
  }
}

</mosaic_0001>

<llo_original>
// kernel: tpu_custom_call.1
$region0: #{tpu_custom_call.1}
  #allocation0 [shape = 'u32[]', space=smem, size = 0x4, offset = 0x4, fixed_abs, tag = 'smem constant byte address 0x4 - core index']
  #allocation1 [shape = 'u32[144,128]{1,0:T(1,128)}', space=vmem, size = 0x12000, scoped, tag = 'internal scratch']
  %s0 = inlined_call_operand.vmem [shape: f32[8,8], index: 0, kind: input, shape index: {}]
  %s1 = inlined_call_operand.hbm [shape: f32[8,8], index: 1, kind: input, shape index: {}]
  %s2 = inlined_call_operand.vmem [shape: f32[8,1], index: 2, kind: input, shape index: {}]
  %s3 = inlined_call_operand.hbm [shape: f32[2,4,8,1024], index: 3, kind: input, shape index: {}]
  %s4 = inlined_call_operand.hbm [shape: f32[2,4,8,1024], index: 4, kind: output, shape index: {}]
  %s5 = sld [smem:[#allocation0]]
  $region57: #{tpu_custom_call.1} parent=0
    _
  %s7 = ssub.s32 1, %s5
  %s8 = scalar_select 0, %s7, %s5
  $region1: #{tpu_custom_call.1} parent=0
    #allocation2 [shape = 'u8[4096]{0}', space=vmem, size = 0x1000, scoped, tag = 'input window, operand 1, single buffered']
    #allocation3 [shape = 's32[2]{0}', space=sflag, size = 0x8, scoped, tag = 'scoped memory for tpu_custom_call.1']
    #allocation4 [shape = 's32[2]{0}', space=sflag, size = 0x8, scoped, tag = 'scoped memory for tpu_custom_call.1']
    #allocation5 [shape = 'u8[131072]{0}', space=vmem, size = 0x20000, scoped, tag = 'input window, operand 3']
    #allocation6 [shape = 's32[2]{0}', space=sflag, size = 0x8, scoped, tag = 'scoped memory for tpu_custom_call.1']
    #allocation7 [shape = 'u8[131072]{0}', space=vmem, size = 0x20000, scoped, tag = 'output window, operand 0']
    %9 = vsyncpa [#allocation3], 0
    %10 = vsyncpa [#allocation6], 0
    %s11 = scalar_lea.sflag [#allocation6], 1
    %12 = vsyncpa %s11, 0
    %13 = vsyncpa [#allocation4], 0
    %s14 = scalar_lea.sflag [#allocation4], 1
    %15 = vsyncpa %s14, 0
    loop: start=0, step=1, limit=6
    $region2: #{tpu_custom_call.1} parent=1 // loop_pre_header
      _
    $region3: #{tpu_custom_call.1} parent=1 // loop_header
      %s17 = sphi 0, %s21
      %p18 = scmp.ge.s32.totalorder %s17, 6
      %s24 = sphi 0, %s36
      %s25 = sphi 0, %s32
      %s26 = sphi 0, %s24
      %s27 = sphi 0, %s25
      %s28 = sphi 0, %s26
      %s29 = sphi 0, %s27
      %s37 = sphi 0, %s37
      %s39 = sphi 0, %s37
      %s40 = sphi 0, %s39
      %s54 = sphi 0, %s40
      %s58 = sphi 0, %s58
      %s60 = sphi 0, %s58
      %s61 = sphi 0, %s60
      %s75 = sphi 0, %s61
      %s79 = sphi 0, %s79
      %s81 = sphi 0, %s79
      %s82 = sphi 0, %s81
      %s96 = sphi 0, %s82
      %s104 = sphi 0, %s106
      %s107 = sphi 0, %s104
      %s108 = sphi 0, %s107
      %s124 = sphi 0, %s108
      %s132 = sphi 0, %s134
      %s135 = sphi 0, %s132
      %s136 = sphi 0, %s135
      %s152 = sphi 0, %s136
    $region4: #{tpu_custom_call.1} parent=1 // loop_header_branch
      %20 = sbr.rel (%p18) target = $region8
    $region5: #{tpu_custom_call.1} parent=1 // loop_body
      %s22 = ssub.s32 %s17, 1
      %s23 = ssub.s32 %s17, 2
      %s30 = sadd.s32 1, %s25
      %p31 = scmp.ge.s32.totalorder %s30, 2
      %s32 = scalar_select %p31, 0, %s30
      %s33 = sadd.s32 1, %s24
      %s34 = scalar_select %p31, %s33, %s24
      %p35 = scmp.ge.s32.totalorder %s34, 2
      %s36 = scalar_select %p35, 0, %s34
      %s38 = sadd.s32 %s37, 1
      %p41 = scmp.eq.s32.totalorder %s17, 3
      %p42 = scmp.ne.s32.totalorder %s37, %s39
      %p43 = scmp.eq.s32.totalorder %s17, 0
      %p44 = por %p42, %p43
      %p45 = scmp.ne.s32.totalorder %s37, %s39
      %p46 = scmp.eq.s32.totalorder %s22, 3
      %p47 = por %p45, %p46
      %p48 = scmp.ne.s32.totalorder %s39, %s40
      %p49 = scmp.eq.s32.totalorder %s22, 0
      %p50 = por %p48, %p49
      %p51 = scmp.ne.s32.totalorder %s39, %s40
      %p52 = scmp.eq.s32.totalorder %s23, 3
      %p53 = por %p51, %p52
      %p55 = scmp.ne.s32.totalorder %s40, %s54
      %p56 = scmp.eq.s32.totalorder %s23, 0
      %p57 = por %p55, %p56
      %s59 = sadd.s32 %s58, 1
      %p62 = scmp.eq.s32.totalorder %s17, 3
      %p63 = scmp.ne.s32.totalorder %s58, %s60
      %p64 = scmp.eq.s32.totalorder %s17, 0
      %p65 = por %p63, %p64
      %p66 = scmp.ne.s32.totalorder %s58, %s60
      %p67 = scmp.eq.s32.totalorder %s22, 3
      %p68 = por %p66, %p67
      %p69 = scmp.ne.s32.totalorder %s60, %s61
      %p70 = scmp.eq.s32.totalorder %s22, 0
      %p71 = por %p69, %p70
      %p72 = scmp.ne.s32.totalorder %s60, %s61
      %p73 = scmp.eq.s32.totalorder %s23, 3
      %p74 = por %p72, %p73
      %p76 = scmp.ne.s32.totalorder %s61, %s75
      %p77 = scmp.eq.s32.totalorder %s23, 0
      %p78 = por %p76, %p77
      %s80 = sadd.s32 %s79, 1
      %p83 = scmp.eq.s32.totalorder %s17, 3
      %p84 = scmp.ne.s32.totalorder %s79, %s81
      %p85 = scmp.eq.s32.totalorder %s17, 0
      %p86 = por %p84, %p85
      %p87 = scmp.ne.s32.totalorder %s79, %s81
      %p88 = scmp.eq.s32.totalorder %s22, 3
      %p89 = por %p87, %p88
      %p90 = scmp.ne.s32.totalorder %s81, %s82
      %p91 = scmp.eq.s32.totalorder %s22, 0
      %p92 = por %p90, %p91
      %p93 = scmp.ne.s32.totalorder %s81, %s82
      %p94 = scmp.eq.s32.totalorder %s23, 3
      %p95 = por %p93, %p94
      %p97 = scmp.ne.s32.totalorder %s82, %s96
      %p98 = scmp.eq.s32.totalorder %s23, 0
      %p99 = por %p97, %p98
      %s100 = ssub.s32 %s24, %s36
      %s101 = ssub.s32 %s25, %s32
      %s102 = sor.u32 %s100, %s101
      %p103 = scmp.eq.s32.totalorder %s102, 0
      %s105 = sadd.s32 %s104, 1
      %s106 = scalar_select %p103, %s104, %s105
      %p109 = pneg %p103
      %p110 = scmp.eq.s32.totalorder %s17, 3
      %p111 = por %p109, %p110
      %p112 = scmp.ne.s32.totalorder %s104, %s107
      %p113 = scmp.eq.s32.totalorder %s17, 0
      %p114 = por %p112, %p113
      %p115 = scmp.ne.s32.totalorder %s104, %s107
      %p116 = scmp.eq.s32.totalorder %s22, 3
      %p117 = por %p115, %p116
      %p118 = scmp.ne.s32.totalorder %s107, %s108
      %p119 = scmp.eq.s32.totalorder %s22, 0
      %p120 = por %p118, %p119
      %p121 = scmp.ne.s32.totalorder %s107, %s108
      %p122 = scmp.eq.s32.totalorder %s23, 3
      %p123 = por %p121, %p122
      %p125 = scmp.ne.s32.totalorder %s108, %s124
      %p126 = scmp.eq.s32.totalorder %s23, 0
      %p127 = por %p125, %p126
      %s128 = ssub.s32 %s24, %s36
      %s129 = ssub.s32 %s25, %s32
      %s130 = sor.u32 %s128, %s129
      %p131 = scmp.eq.s32.totalorder %s130, 0
      %s133 = sadd.s32 %s132, 1
      %s134 = scalar_select %p131, %s132, %s133
      %p137 = pneg %p131
      %p138 = scmp.eq.s32.totalorder %s17, 3
      %p139 = por %p137, %p138
      %p140 = scmp.ne.s32.totalorder %s132, %s135
      %p141 = scmp.eq.s32.totalorder %s17, 0
      %p142 = por %p140, %p141
      %p143 = scmp.ne.s32.totalorder %s132, %s135
      %p144 = scmp.eq.s32.totalorder %s22, 3
      %p145 = por %p143, %p144
      %p146 = scmp.ne.s32.totalorder %s135, %s136
      %p147 = scmp.eq.s32.totalorder %s22, 0
      %p148 = por %p146, %p147
      %p149 = scmp.ne.s32.totalorder %s135, %s136
      %p150 = scmp.eq.s32.totalorder %s23, 3
      %p151 = por %p149, %p150
      %p153 = scmp.ne.s32.totalorder %s136, %s152
      %p154 = scmp.eq.s32.totalorder %s23, 0
      %p155 = por %p153, %p154
      %p156 = scmp.le.s32.totalorder 1, %s17
      %p157 = scmp.lt.s32.totalorder %s17, 5
      %p158 = pnand %p156, %p157
      %p159 = pneg %p158
      // Predicated region
      $region9: #{tpu_custom_call.1} parent=5 // pred_check
        _
      $region10: #{tpu_custom_call.1} parent=5 // pred_check_branch
        %161 = sbr.rel (%p158) target = $region12
      $region11: #{tpu_custom_call.1} parent=5 // pred_region
        %s162 = ssub.s32 %s17, 1
        // Predicated region
        $region13: #{tpu_custom_call.1} parent=11 // pred_check
          %p163 = pneg %p50
        $region14: #{tpu_custom_call.1} parent=11 // pred_check_branch
          %165 = sbr.rel (%p163) target = $region16
        $region15: #{tpu_custom_call.1} parent=11 // pred_region
          _
        $region16: #{tpu_custom_call.1} parent=11 // pred_fallthru
          _
        // Predicated region
        $region17: #{tpu_custom_call.1} parent=11 // pred_check
          %p166 = pneg %p71
        $region18: #{tpu_custom_call.1} parent=11 // pred_check_branch
          %168 = sbr.rel (%p166) target = $region20
        $region19: #{tpu_custom_call.1} parent=11 // pred_region
          %s170 = ssub.s32 128, 128
          %171 = vsyncadd [#allocation3], %s170
          %s173 = sshll.u32 [#allocation2], 4
          %s174 = int_to_ptr.vmem [resolvable:$true] %s173
          %176 = dma.hbm_to_vmem [thread:$0]  %s1, 128, %s174, [#allocation3]
        $region20: #{tpu_custom_call.1} parent=11 // pred_fallthru
          _
        // Predicated region
        $region21: #{tpu_custom_call.1} parent=11 // pred_check
          %p177 = pneg %p92
        $region22: #{tpu_custom_call.1} parent=11 // pred_check_branch
          %179 = sbr.rel (%p177) target = $region24
        $region23: #{tpu_custom_call.1} parent=11 // pred_region
          _
        $region24: #{tpu_custom_call.1} parent=11 // pred_fallthru
          _
      $region12: #{tpu_custom_call.1} parent=5 // pred_fallthru
        _
      %p180 = scmp.lt.s32.totalorder %s17, 4
      // Predicated region
      $region25: #{tpu_custom_call.1} parent=5 // pred_check
        %p181 = pneg %p180
      $region26: #{tpu_custom_call.1} parent=5 // pred_check_branch
        %183 = sbr.rel (%p181) target = $region28
      $region27: #{tpu_custom_call.1} parent=5 // pred_region
        // Predicated region
        $region29: #{tpu_custom_call.1} parent=27 // pred_check
          %p184 = pneg %p114
        $region30: #{tpu_custom_call.1} parent=27 // pred_check_branch
          %186 = sbr.rel (%p184) target = $region32
        $region31: #{tpu_custom_call.1} parent=27 // pred_region
          %s187 = sand.u32 %s104, 1
          %s188 = scalar_lea.sflag [#allocation6], %s187
          %s189 = sand.u32 %s104, 1
          %s190 = smul.addr %s189, 128
          %s191 = scalar_lea.vmem [#allocation5], %s190
          %s192 = smul.u32 4, %s25
          %s194 = ssub.s32 2048, 2048
          %195 = vsyncadd %s188, %s194
          %s196 = smul.addr %s24, 32
          %s197 = sadd.s32 %s192, %s196
          %s198 = smul.addr %s197, 128
          %s199 = scalar_lea.hbm %s3, %s198
          %s200 = sshll.u32 %s191, 4
          %s201 = int_to_ptr.vmem [resolvable:$true] %s200
          %206 = dma.hbm_to_vmem [thread:$0]  %s199, 2048, %s201, %s188, 1024, 512, 32
        $region32: #{tpu_custom_call.1} parent=27 // pred_fallthru
          _
      $region28: #{tpu_custom_call.1} parent=5 // pred_fallthru
        _
      %p207 = scmp.le.s32.totalorder 1, %s17
      %p208 = scmp.lt.s32.totalorder %s17, 5
      %p209 = pnand %p207, %p208
      %p210 = pneg %p209
      // Predicated region
      $region33: #{tpu_custom_call.1} parent=5 // pred_check
        _
      $region34: #{tpu_custom_call.1} parent=5 // pred_check_branch
        %212 = sbr.rel (%p209) target = $region36
      $region35: #{tpu_custom_call.1} parent=5 // pred_region
        %s213 = ssub.s32 %s17, 1
        // Predicated region
        $region37: #{tpu_custom_call.1} parent=35 // pred_check
          %p214 = pneg %p71
        $region38: #{tpu_custom_call.1} parent=35 // pred_check_branch
          %216 = sbr.rel (%p214) target = $region40
        $region39: #{tpu_custom_call.1} parent=35 // pred_region
          %217 = dma.done [#allocation3], 128
        $region40: #{tpu_custom_call.1} parent=35 // pred_fallthru
          _
        %s218 = sand.u32 %s107, 1
        %s219 = scalar_lea.sflag [#allocation6], %s218
        %s220 = sand.u32 %s107, 1
        %s221 = smul.addr %s220, 128
        %s222 = scalar_lea.vmem [#allocation5], %s221
        // Predicated region
        $region41: #{tpu_custom_call.1} parent=35 // pred_check
          %p223 = pneg %p120
        $region42: #{tpu_custom_call.1} parent=35 // pred_check_branch
          %225 = sbr.rel (%p223) target = $region44
        $region43: #{tpu_custom_call.1} parent=35 // pred_region
          %226 = dma.done %s219, 2048
        $region44: #{tpu_custom_call.1} parent=35 // pred_fallthru
          _
        %p227 = pneg %p50
        %p228 = pneg %p47
        %p229 = pneg %p71
        %p230 = pneg %p68
        %p231 = pneg %p92
        %p232 = pneg %p89
        %s233 = sand.u32 %s107, 1
        %s234 = scalar_lea.sflag [#allocation6], %s233
        %s235 = sand.u32 %s107, 1
        %s236 = smul.addr %s235, 128
        %s237 = scalar_lea.vmem [#allocation5], %s236
        %p238 = pneg %p120
        %p239 = pneg %p117
        %p240 = pneg %p148
        %p241 = pneg %p145
        %s242 = sand.u32 %s135, 1
        %s243 = scalar_lea.sflag [#allocation4], %s242
        %s244 = sand.u32 %s135, 1
        %s245 = smul.addr %s244, 128
        %s246 = scalar_lea.vmem [#allocation7], %s245
        %s247 = smul.u32 4, %s27
        %s248 = smul.u32 4, %s27
        %v249 = vld [vmem:[%s222] sm:$0xff]
        %v250 = vld [vmem:[%s222 + $0x8] sm:$0xff]
        %v251 = vld [vmem:[%s222 + $0x10] sm:$0xff]
        %v252 = vld [vmem:[%s222 + $0x18] sm:$0xff]
        %v253 = vld [vmem:[%s222 + $0x20] sm:$0xff]
        %v254 = vld [vmem:[%s222 + $0x28] sm:$0xff]
        %v255 = vld [vmem:[%s222 + $0x30] sm:$0xff]
        %v256 = vld [vmem:[%s222 + $0x38] sm:$0xff]
        %v257 = vld [vmem:[%s222 + $0x40] sm:$0xff]
        %v258 = vld [vmem:[%s222 + $0x48] sm:$0xff]
        %v259 = vld [vmem:[%s222 + $0x50] sm:$0xff]
        %v260 = vld [vmem:[%s222 + $0x58] sm:$0xff]
        %v261 = vld [vmem:[%s222 + $0x60] sm:$0xff]
        %v262 = vld [vmem:[%s222 + $0x68] sm:$0xff]
        %v263 = vld [vmem:[%s222 + $0x70] sm:$0xff]
        %v264 = vld [vmem:[%s222 + $0x78] sm:$0xff]
        %v265 = vadd.f32 %v249, %v253
        %v266 = vadd.f32 %v265, %v257
        %v267 = vadd.f32 %v266, %v261
        %v268 = vadd.f32 %v250, %v254
        %v269 = vadd.f32 %v268, %v258
        %v270 = vadd.f32 %v269, %v262
        %v271 = vadd.f32 %v251, %v255
        %v272 = vadd.f32 %v271, %v259
        %v273 = vadd.f32 %v272, %v263
        %v274 = vadd.f32 %v252, %v256
        %v275 = vadd.f32 %v274, %v260
        %v276 = vadd.f32 %v275, %v264
        %v277 = vrcp.pop 4.0
        %v278 = vmul.f32 %v267, %v277
        %v279 = vmul.f32 %v270, %v277
        %v280 = vmul.f32 %v273, %v277
        %v281 = vmul.f32 %v276, %v277
        %v282 = vmax.f32 %v249, %v253
        %v283 = vmax.f32 %v282, %v257
        %v284 = vmax.f32 %v283, %v261
        %v285 = vmax.f32 %v250, %v254
        %v286 = vmax.f32 %v285, %v258
        %v287 = vmax.f32 %v286, %v262
        %v288 = vmax.f32 %v251, %v255
        %v289 = vmax.f32 %v288, %v259
        %v290 = vmax.f32 %v289, %v263
        %v291 = vmax.f32 %v252, %v256
        %v292 = vmax.f32 %v291, %v260
        %v293 = vmax.f32 %v292, %v264
        %v294 = vld [vmem:[%s0] sm:$0xff]
        %v295 = vld [vmem:[#allocation2] sm:$0xff]
        %vm296 = vcmask 64512
        %v298 = vsel %vm296, %v295, 0
        %300 = vmatprep.subr.mxu0 %v287
        %301 = vmatpush1.msra.mxu0 %v284
        %302 = vmatprep.subr.mxu0 0.0
        %303 = vmatpush1.msra.mxu0 0.0
        %304 = vmatprep.subr.mxu0 0.0
        %305 = vmatpush1.msra.mxu0 0.0
        %306 = vmatprep.subr.mxu0 0.0
        %307 = vmatpush1.msra.mxu0 0.0
        %308 = vmatprep.subr.mxu0 0.0
        %309 = vmatpush1.msra.mxu0 0.0
        %310 = vmatprep.subr.mxu0 0.0
        %311 = vmatpush1.msra.mxu0 0.0
        %312 = vmatprep.subr.mxu0 0.0
        %313 = vmatpush1.msra.mxu0 0.0
        %314 = vmatprep.subr.mxu0 0.0
        %315 = vmatpush1.msra.mxu0 0.0
        %316 = vmatprep.subr.mxu0 0.0
        %317 = vmatpush1.msra.mxu0 0.0
        %318 = vmatprep.subr.mxu0 0.0
        %319 = vmatpush1.msra.mxu0 0.0
        %320 = vmatprep.subr.mxu0 0.0
        %321 = vmatpush1.msra.mxu0 0.0
        %322 = vmatprep.subr.mxu0 0.0
        %323 = vmatpush1.msra.mxu0 0.0
        %324 = vmatprep.subr.mxu0 0.0
        %325 = vmatpush1.msra.mxu0 0.0
        %326 = vmatprep.subr.mxu0 0.0
        %327 = vmatpush1.msra.mxu0 0.0
        %328 = vmatprep.subr.mxu0 0.0
        %329 = vmatpush1.msra.mxu0 0.0
        %330 = vmatprep.subr.mxu0 0.0
        %331 = vmatpush1.msra.mxu0 0.0
        %332 = vmatprep.subr.mxu0 0.0
        %333 = vmatpush1.msra.mxu0 0.0
        %334 = vmatprep.subr.mxu0 0.0
        %335 = vmatpush1.msra.mxu0 0.0
        %336 = vmatprep.subr.mxu0 0.0
        %337 = vmatpush1.msra.mxu0 0.0
        %338 = vmatprep.subr.mxu0 0.0
        %339 = vmatpush1.msra.mxu0 0.0
        %340 = vmatprep.subr.mxu0 0.0
        %341 = vmatpush1.msra.mxu0 0.0
        %342 = vmatprep.subr.mxu0 0.0
        %343 = vmatpush1.msra.mxu0 0.0
        %344 = vmatprep.subr.mxu0 0.0
        %345 = vmatpush1.msra.mxu0 0.0
        %346 = vmatprep.subr.mxu0 0.0
        %347 = vmatpush1.msra.mxu0 0.0
        %348 = vmatprep.subr.mxu0 0.0
        %349 = vmatpush1.msra.mxu0 0.0
        %350 = vmatprep.subr.mxu0 0.0
        %351 = vmatpush1.msra.mxu0 0.0
        %352 = vmatprep.subr.mxu0 0.0
        %353 = vmatpush1.msra.mxu0 0.0
        %354 = vmatprep.subr.mxu0 0.0
        %355 = vmatpush1.msra.mxu0 0.0
        %356 = vmatprep.subr.mxu0 0.0
        %357 = vmatpush1.msra.mxu0 0.0
        %358 = vmatprep.subr.mxu0 0.0
        %359 = vmatpush1.msra.mxu0 0.0
        %360 = vmatprep.subr.mxu0 0.0
        %361 = vmatpush1.msra.mxu0 0.0
        %362 = vmatprep.subr.mxu0 0.0
        %363 = vmatpush1.msra.mxu0 0.0
        %364 = vmatprep.mubr.f32.mxu0 0.0
        %365 = vmatmul.mubr.f32.gmra.mrb[0].mxu0 %v298
        %v366 = vpop.f32.mrb[0].mxu0
        %v367 = vadd.f32 0.0, %v366
        %v368 = vpop.f32.mrb[0].mxu0
        %v369 = vadd.f32 0.0, %v368
        %370 = vdwg.mxu0
        %371 = vmatprep.subr.mxu0 %v293
        %372 = vmatpush1.msra.mxu0 %v290
        %373 = vmatprep.subr.mxu0 0.0
        %374 = vmatpush1.msra.mxu0 0.0
        %375 = vmatprep.subr.mxu0 0.0
        %376 = vmatpush1.msra.mxu0 0.0
        %377 = vmatprep.subr.mxu0 0.0
        %378 = vmatpush1.msra.mxu0 0.0
        %379 = vmatprep.subr.mxu0 0.0
        %380 = vmatpush1.msra.mxu0 0.0
        %381 = vmatprep.subr.mxu0 0.0
        %382 = vmatpush1.msra.mxu0 0.0
        %383 = vmatprep.subr.mxu0 0.0
        %384 = vmatpush1.msra.mxu0 0.0
        %385 = vmatprep.subr.mxu0 0.0
        %386 = vmatpush1.msra.mxu0 0.0
        %387 = vmatprep.subr.mxu0 0.0
        %388 = vmatpush1.msra.mxu0 0.0
        %389 = vmatprep.subr.mxu0 0.0
        %390 = vmatpush1.msra.mxu0 0.0
        %391 = vmatprep.subr.mxu0 0.0
        %392 = vmatpush1.msra.mxu0 0.0
        %393 = vmatprep.subr.mxu0 0.0
        %394 = vmatpush1.msra.mxu0 0.0
        %395 = vmatprep.subr.mxu0 0.0
        %396 = vmatpush1.msra.mxu0 0.0
        %397 = vmatprep.subr.mxu0 0.0
        %398 = vmatpush1.msra.mxu0 0.0
        %399 = vmatprep.subr.mxu0 0.0
        %400 = vmatpush1.msra.mxu0 0.0
        %401 = vmatprep.subr.mxu0 0.0
        %402 = vmatpush1.msra.mxu0 0.0
        %403 = vmatprep.subr.mxu0 0.0
        %404 = vmatpush1.msra.mxu0 0.0
        %405 = vmatprep.subr.mxu0 0.0
        %406 = vmatpush1.msra.mxu0 0.0
        %407 = vmatprep.subr.mxu0 0.0
        %408 = vmatpush1.msra.mxu0 0.0
        %409 = vmatprep.subr.mxu0 0.0
        %410 = vmatpush1.msra.mxu0 0.0
        %411 = vmatprep.subr.mxu0 0.0
        %412 = vmatpush1.msra.mxu0 0.0
        %413 = vmatprep.subr.mxu0 0.0
        %414 = vmatpush1.msra.mxu0 0.0
        %415 = vmatprep.subr.mxu0 0.0
        %416 = vmatpush1.msra.mxu0 0.0
        %417 = vmatprep.subr.mxu0 0.0
        %418 = vmatpush1.msra.mxu0 0.0
        %419 = vmatprep.subr.mxu0 0.0
        %420 = vmatpush1.msra.mxu0 0.0
        %421 = vmatprep.subr.mxu0 0.0
        %422 = vmatpush1.msra.mxu0 0.0
        %423 = vmatprep.subr.mxu0 0.0
        %424 = vmatpush1.msra.mxu0 0.0
        %425 = vmatprep.subr.mxu0 0.0
        %426 = vmatpush1.msra.mxu0 0.0
        %427 = vmatprep.subr.mxu0 0.0
        %428 = vmatpush1.msra.mxu0 0.0
        %429 = vmatprep.subr.mxu0 0.0
        %430 = vmatpush1.msra.mxu0 0.0
        %431 = vmatprep.subr.mxu0 0.0
        %432 = vmatpush1.msra.mxu0 0.0
        %433 = vmatprep.subr.mxu0 0.0
        %434 = vmatpush1.msra.mxu0 0.0
        %435 = vmatprep.mubr.f32.mxu0 0.0
        %436 = vmatmul.mubr.f32.gmra.mrb[0].mxu0 %v298
        %v437 = vpop.f32.mrb[0].mxu0
        %v438 = vadd.f32 0.0, %v437
        %v439 = vpop.f32.mrb[0].mxu0
        %v440 = vadd.f32 0.0, %v439
        %441 = vdwg.mxu0
        %v443 = vsel %vm296, %v294, 0
        %445 = vmatprep.subr.mxu0 %v279
        %446 = vmatpush1.msra.mxu0 %v278
        %447 = vmatprep.subr.mxu0 0.0
        %448 = vmatpush1.msra.mxu0 0.0
        %449 = vmatprep.subr.mxu0 0.0
        %450 = vmatpush1.msra.mxu0 0.0
        %451 = vmatprep.subr.mxu0 0.0
        %452 = vmatpush1.msra.mxu0 0.0
        %453 = vmatprep.subr.mxu0 0.0
        %454 = vmatpush1.msra.mxu0 0.0
        %455 = vmatprep.subr.mxu0 0.0
        %456 = vmatpush1.msra.mxu0 0.0
        %457 = vmatprep.subr.mxu0 0.0
        %458 = vmatpush1.msra.mxu0 0.0
        %459 = vmatprep.subr.mxu0 0.0
        %460 = vmatpush1.msra.mxu0 0.0
        %461 = vmatprep.subr.mxu0 0.0
        %462 = vmatpush1.msra.mxu0 0.0
        %463 = vmatprep.subr.mxu0 0.0
        %464 = vmatpush1.msra.mxu0 0.0
        %465 = vmatprep.subr.mxu0 0.0
        %466 = vmatpush1.msra.mxu0 0.0
        %467 = vmatprep.subr.mxu0 0.0
        %468 = vmatpush1.msra.mxu0 0.0
        %469 = vmatprep.subr.mxu0 0.0
        %470 = vmatpush1.msra.mxu0 0.0
        %471 = vmatprep.subr.mxu0 0.0
        %472 = vmatpush1.msra.mxu0 0.0
        %473 = vmatprep.subr.mxu0 0.0
        %474 = vmatpush1.msra.mxu0 0.0
        %475 = vmatprep.subr.mxu0 0.0
        %476 = vmatpush1.msra.mxu0 0.0
        %477 = vmatprep.subr.mxu0 0.0
        %478 = vmatpush1.msra.mxu0 0.0
        %479 = vmatprep.subr.mxu0 0.0
        %480 = vmatpush1.msra.mxu0 0.0
        %481 = vmatprep.subr.mxu0 0.0
        %482 = vmatpush1.msra.mxu0 0.0
        %483 = vmatprep.subr.mxu0 0.0
        %484 = vmatpush1.msra.mxu0 0.0
        %485 = vmatprep.subr.mxu0 0.0
        %486 = vmatpush1.msra.mxu0 0.0
        %487 = vmatprep.subr.mxu0 0.0
        %488 = vmatpush1.msra.mxu0 0.0
        %489 = vmatprep.subr.mxu0 0.0
        %490 = vmatpush1.msra.mxu0 0.0
        %491 = vmatprep.subr.mxu0 0.0
        %492 = vmatpush1.msra.mxu0 0.0
        %493 = vmatprep.subr.mxu0 0.0
        %494 = vmatpush1.msra.mxu0 0.0
        %495 = vmatprep.subr.mxu0 0.0
        %496 = vmatpush1.msra.mxu0 0.0
        %497 = vmatprep.subr.mxu0 0.0
        %498 = vmatpush1.msra.mxu0 0.0
        %499 = vmatprep.subr.mxu0 0.0
        %500 = vmatpush1.msra.mxu0 0.0
        %501 = vmatprep.subr.mxu0 0.0
        %502 = vmatpush1.msra.mxu0 0.0
        %503 = vmatprep.subr.mxu0 0.0
        %504 = vmatpush1.msra.mxu0 0.0
        %505 = vmatprep.subr.mxu0 0.0
        %506 = vmatpush1.msra.mxu0 0.0
        %507 = vmatprep.subr.mxu0 0.0
        %508 = vmatpush1.msra.mxu0 0.0
        %509 = vmatprep.mubr.f32.mxu0 0.0
        %510 = vmatmul.mubr.f32.gmra.mrb[0].mxu0 %v443
        %v511 = vpop.f32.mrb[0].mxu0
        %v512 = vadd.f32 %v367, %v511
        %v513 = vpop.f32.mrb[0].mxu0
        %v514 = vadd.f32 %v369, %v513
        %515 = vdwg.mxu0
        %516 = vmatprep.subr.mxu0 %v281
        %517 = vmatpush1.msra.mxu0 %v280
        %518 = vmatprep.subr.mxu0 0.0
        %519 = vmatpush1.msra.mxu0 0.0
        %520 = vmatprep.subr.mxu0 0.0
        %521 = vmatpush1.msra.mxu0 0.0
        %522 = vmatprep.subr.mxu0 0.0
        %523 = vmatpush1.msra.mxu0 0.0
        %524 = vmatprep.subr.mxu0 0.0
        %525 = vmatpush1.msra.mxu0 0.0
        %526 = vmatprep.subr.mxu0 0.0
        %527 = vmatpush1.msra.mxu0 0.0
        %528 = vmatprep.subr.mxu0 0.0
        %529 = vmatpush1.msra.mxu0 0.0
        %530 = vmatprep.subr.mxu0 0.0
        %531 = vmatpush1.msra.mxu0 0.0
        %532 = vmatprep.subr.mxu0 0.0
        %533 = vmatpush1.msra.mxu0 0.0
        %534 = vmatprep.subr.mxu0 0.0
        %535 = vmatpush1.msra.mxu0 0.0
        %536 = vmatprep.subr.mxu0 0.0
        %537 = vmatpush1.msra.mxu0 0.0
        %538 = vmatprep.subr.mxu0 0.0
        %539 = vmatpush1.msra.mxu0 0.0
        %540 = vmatprep.subr.mxu0 0.0
        %541 = vmatpush1.msra.mxu0 0.0
        %542 = vmatprep.subr.mxu0 0.0
        %543 = vmatpush1.msra.mxu0 0.0
        %544 = vmatprep.subr.mxu0 0.0
        %545 = vmatpush1.msra.mxu0 0.0
        %546 = vmatprep.subr.mxu0 0.0
        %547 = vmatpush1.msra.mxu0 0.0
        %548 = vmatprep.subr.mxu0 0.0
        %549 = vmatpush1.msra.mxu0 0.0
        %550 = vmatprep.subr.mxu0 0.0
        %551 = vmatpush1.msra.mxu0 0.0
        %552 = vmatprep.subr.mxu0 0.0
        %553 = vmatpush1.msra.mxu0 0.0
        %554 = vmatprep.subr.mxu0 0.0
        %555 = vmatpush1.msra.mxu0 0.0
        %556 = vmatprep.subr.mxu0 0.0
        %557 = vmatpush1.msra.mxu0 0.0
        %558 = vmatprep.subr.mxu0 0.0
        %559 = vmatpush1.msra.mxu0 0.0
        %560 = vmatprep.subr.mxu0 0.0
        %561 = vmatpush1.msra.mxu0 0.0
        %562 = vmatprep.subr.mxu0 0.0
        %563 = vmatpush1.msra.mxu0 0.0
        %564 = vmatprep.subr.mxu0 0.0
        %565 = vmatpush1.msra.mxu0 0.0
        %566 = vmatprep.subr.mxu0 0.0
        %567 = vmatpush1.msra.mxu0 0.0
        %568 = vmatprep.subr.mxu0 0.0
        %569 = vmatpush1.msra.mxu0 0.0
        %570 = vmatprep.subr.mxu0 0.0
        %571 = vmatpush1.msra.mxu0 0.0
        %572 = vmatprep.subr.mxu0 0.0
        %573 = vmatpush1.msra.mxu0 0.0
        %574 = vmatprep.subr.mxu0 0.0
        %575 = vmatpush1.msra.mxu0 0.0
        %576 = vmatprep.subr.mxu0 0.0
        %577 = vmatpush1.msra.mxu0 0.0
        %578 = vmatprep.subr.mxu0 0.0
        %579 = vmatpush1.msra.mxu0 0.0
        %580 = vmatprep.mubr.f32.mxu0 0.0
        %581 = vmatmul.mubr.f32.gmra.mrb[0].mxu0 %v443
        %v582 = vpop.f32.mrb[0].mxu0
        %v583 = vadd.f32 %v438, %v582
        %v584 = vpop.f32.mrb[0].mxu0
        %v585 = vadd.f32 %v440, %v584
        %586 = vdwg.mxu0
        %v587 = vld [vmem:[%s2] sm:$0xff]
        %589 = vset.pattern.permute.xlu0 0
        %590 = vperm.xlu0 %589, %v587
        %v591 = vpop.permute.xlu0 %590
        %v593 = vadd.f32 %v512, %v591
        %v594 = vadd.f32 %v514, %v591
        %v595 = vadd.f32 %v583, %v591
        %v596 = vadd.f32 %v585, %v591
        %v597 = vxor.u32 %v593, 2147483648
        %v598 = vxor.u32 %v594, 2147483648
        %v599 = vxor.u32 %v595, 2147483648
        %v600 = vxor.u32 %v596, 2147483648
        %v601 = vmul.f32 %v597, 1.442695
        %v602 = vpow.pop %v601
        %v603 = vmul.f32 %v598, 1.442695
        %v604 = vpow.pop %v603
        %v605 = vmul.f32 %v599, 1.442695
        %v606 = vpow.pop %v605
        %v607 = vmul.f32 %v600, 1.442695
        %v608 = vpow.pop %v607
        %v609 = vadd.f32 %v602, 1.0
        %v610 = vadd.f32 %v604, 1.0
        %v611 = vadd.f32 %v606, 1.0
        %v612 = vadd.f32 %v608, 1.0
        %v613 = vrcp.pop %v609
        %v614 = vmul.f32 1.0, %v613
        %v615 = vrcp.pop %v610
        %v616 = vmul.f32 1.0, %v615
        %v617 = vrcp.pop %v611
        %v618 = vmul.f32 1.0, %v617
        %v619 = vrcp.pop %v612
        %v620 = vmul.f32 1.0, %v619
        %v621 = vmul.f32 %v249, %v614
        %v622 = vmul.f32 %v250, %v616
        %v623 = vmul.f32 %v251, %v618
        %v624 = vmul.f32 %v252, %v620
        %v625 = vmul.f32 %v253, %v614
        %v626 = vmul.f32 %v254, %v616
        %v627 = vmul.f32 %v255, %v618
        %v628 = vmul.f32 %v256, %v620
        %v629 = vmul.f32 %v257, %v614
        %v630 = vmul.f32 %v258, %v616
        %v631 = vmul.f32 %v259, %v618
        %v632 = vmul.f32 %v260, %v620
        %v633 = vmul.f32 %v261, %v614
        %v634 = vmul.f32 %v262, %v616
        %v635 = vmul.f32 %v263, %v618
        %v636 = vmul.f32 %v264, %v620
        %vm637 = vcmp.gt.f32.partialorder %v621, 0.0
        %vm638 = vcmp.gt.f32.partialorder %v622, 0.0
        %vm639 = vcmp.gt.f32.partialorder %v623, 0.0
        %vm640 = vcmp.gt.f32.partialorder %v624, 0.0
        %vm641 = vcmp.gt.f32.partialorder %v625, 0.0
        %vm642 = vcmp.gt.f32.partialorder %v626, 0.0
        %vm643 = vcmp.gt.f32.partialorder %v627, 0.0
        %vm644 = vcmp.gt.f32.partialorder %v628, 0.0
        %vm645 = vcmp.gt.f32.partialorder %v629, 0.0
        %vm646 = vcmp.gt.f32.partialorder %v630, 0.0
        %vm647 = vcmp.gt.f32.partialorder %v631, 0.0
        %vm648 = vcmp.gt.f32.partialorder %v632, 0.0
        %vm649 = vcmp.gt.f32.partialorder %v633, 0.0
        %vm650 = vcmp.gt.f32.partialorder %v634, 0.0
        %vm651 = vcmp.gt.f32.partialorder %v635, 0.0
        %vm652 = vcmp.gt.f32.partialorder %v636, 0.0
        %v653 = vsel %vm637, 2.0, 1.01
        %v654 = vsel %vm638, 2.0, 1.01
        %v655 = vsel %vm639, 2.0, 1.01
        %v656 = vsel %vm640, 2.0, 1.01
        %v657 = vsel %vm641, 2.0, 1.01
        %v658 = vsel %vm642, 2.0, 1.01
        %v659 = vsel %vm643, 2.0, 1.01
        %v660 = vsel %vm644, 2.0, 1.01
        %v661 = vsel %vm645, 2.0, 1.01
        %v662 = vsel %vm646, 2.0, 1.01
        %v663 = vsel %vm647, 2.0, 1.01
        %v664 = vsel %vm648, 2.0, 1.01
        %v665 = vsel %vm649, 2.0, 1.01
        %v666 = vsel %vm650, 2.0, 1.01
        %v667 = vsel %vm651, 2.0, 1.01
        %v668 = vsel %vm652, 2.0, 1.01
        %v669 = vmul.f32 %v621, %v653
        %v670 = vmul.f32 %v622, %v654
        %v671 = vmul.f32 %v623, %v655
        %v672 = vmul.f32 %v624, %v656
        %v673 = vmul.f32 %v625, %v657
        %v674 = vmul.f32 %v626, %v658
        %v675 = vmul.f32 %v627, %v659
        %v676 = vmul.f32 %v628, %v660
        %v677 = vmul.f32 %v629, %v661
        %v678 = vmul.f32 %v630, %v662
        %v679 = vmul.f32 %v631, %v663
        %v680 = vmul.f32 %v632, %v664
        %v681 = vmul.f32 %v633, %v665
        %v682 = vmul.f32 %v634, %v666
        %v683 = vmul.f32 %v635, %v667
        %v684 = vmul.f32 %v636, %v668
        %685 = vst [vmem:[%s246] sm:$0xff] %v669
        %686 = vst [vmem:[%s246 + $0x8] sm:$0xff] %v670
        %687 = vst [vmem:[%s246 + $0x10] sm:$0xff] %v671
        %688 = vst [vmem:[%s246 + $0x18] sm:$0xff] %v672
        %689 = vst [vmem:[%s246 + $0x20] sm:$0xff] %v673
        %690 = vst [vmem:[%s246 + $0x28] sm:$0xff] %v674
        %691 = vst [vmem:[%s246 + $0x30] sm:$0xff] %v675
        %692 = vst [vmem:[%s246 + $0x38] sm:$0xff] %v676
        %693 = vst [vmem:[%s246 + $0x40] sm:$0xff] %v677
        %694 = vst [vmem:[%s246 + $0x48] sm:$0xff] %v678
        %695 = vst [vmem:[%s246 + $0x50] sm:$0xff] %v679
        %696 = vst [vmem:[%s246 + $0x58] sm:$0xff] %v680
        %697 = vst [vmem:[%s246 + $0x60] sm:$0xff] %v681
        %698 = vst [vmem:[%s246 + $0x68] sm:$0xff] %v682
        %699 = vst [vmem:[%s246 + $0x70] sm:$0xff] %v683
        %700 = vst [vmem:[%s246 + $0x78] sm:$0xff] %v684
        %s701 = sand.u32 %s135, 1
        %s702 = scalar_lea.sflag [#allocation4], %s701
        %s703 = sand.u32 %s135, 1
        %s704 = smul.addr %s703, 128
        %s705 = scalar_lea.vmem [#allocation7], %s704
        // Predicated region
        $region45: #{tpu_custom_call.1} parent=35 // pred_check
          %p706 = pneg %p145
        $region46: #{tpu_custom_call.1} parent=35 // pred_check_branch
          %708 = sbr.rel (%p706) target = $region48
        $region47: #{tpu_custom_call.1} parent=35 // pred_region
          %s709 = smul.u32 4, %s27
          %s711 = ssub.s32 2048, 2048
          %712 = vsyncadd %s702, %s711
          %s713 = smul.addr %s26, 32
          %s714 = sadd.s32 %s709, %s713
          %s715 = smul.addr %s714, 128
          %s716 = scalar_lea.hbm %s4, %s715
          %s717 = sshll.u32 %s705, 4
          %s718 = int_to_ptr.vmem [resolvable:$true] %s717
          %723 = dma.vmem_to_hbm [thread:$0]  %s718, 2048, %s716, %s702, 512, 1024, 32
        $region48: #{tpu_custom_call.1} parent=35 // pred_fallthru
          _
      $region36: #{tpu_custom_call.1} parent=5 // pred_fallthru
        _
      %p724 = scmp.le.s32.totalorder 2, %s17
      // Predicated region
      $region49: #{tpu_custom_call.1} parent=5 // pred_check
        %p725 = pneg %p724
      $region50: #{tpu_custom_call.1} parent=5 // pred_check_branch
        %727 = sbr.rel (%p725) target = $region52
      $region51: #{tpu_custom_call.1} parent=5 // pred_region
        %s728 = ssub.s32 %s17, 2
        // Predicated region
        $region53: #{tpu_custom_call.1} parent=51 // pred_check
          %p729 = pneg %p151
        $region54: #{tpu_custom_call.1} parent=51 // pred_check_branch
          %731 = sbr.rel (%p729) target = $region56
        $region55: #{tpu_custom_call.1} parent=51 // pred_region
          %s732 = sand.u32 %s136, 1
          %s733 = scalar_lea.sflag [#allocation4], %s732
          %s734 = sand.u32 %s136, 1
          %s735 = smul.addr %s734, 128
          %s736 = scalar_lea.vmem [#allocation7], %s735
          %737 = dma.done %s733, 2048
        $region56: #{tpu_custom_call.1} parent=51 // pred_fallthru
          _
      $region52: #{tpu_custom_call.1} parent=5 // pred_fallthru
        _
    $region6: #{tpu_custom_call.1} parent=1 // loop_footer
      %s21 = sadd.s32 1, %s17
    $region7: #{tpu_custom_call.1} parent=1 // loop_footer_branch
      %16 = sbr.rel target = $region3
    $region8: #{tpu_custom_call.1} parent=1 // loop_exit
      _
    %738 = vsyncpa [#allocation3], 1
    %s739 = scalar_lea.sflag [#allocation3], 1
    %740 = vsyncpa %s739, 1
    %741 = vsyncpa [#allocation6], 1
    %s742 = scalar_lea.sflag [#allocation6], 1
    %743 = vsyncpa %s742, 1
    %744 = vsyncpa [#allocation4], 1
    %s745 = scalar_lea.sflag [#allocation4], 1
    %746 = vsyncpa %s745, 1

</llo_original>
